<compile_context>
chip_gen: v7x
topology: tpu7x:2x2x1
jax: 0.10.0
libtpu: 0.0.40
codegen_flags: <defaults>
</compile_context>

<pallas_src>
import functools

import jax
import jax.numpy as jnp
from jax.experimental import pallas as pl
from jax.experimental.pallas import tpu as pltpu

WEIGHTS_FINAL_INIT = 0.003
BIAS_FINAL_INIT = 0.0003


def _round_up(n, m):
    return ((n + m - 1) // m) * m


def actor_kernel(x_ref,
                 w1_ref, b1_ref,
                 w2_ref, b2_ref,
                 w3_ref, b3_ref,
                 wf_ref, bf_ref,
                 lo_ref, scale_ref,
                 o_ref, *, approx_sigmoid):
    compute_dtype = w1_ref.dtype  # bf16 on the fast path, f32 on the exact path

    def sigmoid(z):  # z is always f32 here
        if approx_sigmoid:
            return pl.reciprocal(1.0 + jnp.exp(-z), approx=True)
        return jax.nn.sigmoid(z)

    def silu(z):
        return z * sigmoid(z)

    def layer(h, w_ref, b_ref):
        # MXU matmul in compute_dtype with f32 accumulation; bias add in f32.
        return (jnp.dot(h.astype(compute_dtype), w_ref[...],
                        preferred_element_type=jnp.float32)
                + b_ref[...])

    h = silu(layer(x_ref[...], w1_ref, b1_ref))
    h = silu(layer(h, w2_ref, b2_ref))
    h = silu(layer(h, w3_ref, b3_ref))
    z = layer(h, wf_ref, bf_ref)

    # out = sigmoid(z) * (high - low) + low, with (high - low) precomputed.
    o_ref[...] = (sigmoid(z) * scale_ref[...] + lo_ref[...]).astype(o_ref.dtype)


def actor_forward(x, params, low, high, *,
                  block_b=256,
                  weight_dtype=jnp.bfloat16,
                  approx_sigmoid=True):
    """x: [B, input_dim] float32.  Returns actions [B, output_dim] float32."""
    (w1, b1), (w2, b2), (w3, b3), (wf, bf) = params
    B, in_dim = x.shape
    out_dim = wf.shape[1]

    # Batch tile: multiple of 8 sublanes, no bigger than the (padded) batch.
    tb = min(_round_up(block_b, 8), _round_up(B, 8))
    pB = _round_up(B, tb)
    if pB != B:
        x = jnp.pad(x, ((0, pB - B), (0, 0)))  # padded rows discarded below

    # Precompute the bound scale once; keep bounds / biases in f32.
    low_f = low.astype(jnp.float32)
    scale = (high.astype(jnp.float32) - low_f)

    # Weights go to the MXU compute dtype (bf16 by default); biases stay f32.
    w1c, w2c, w3c, wfc = (w.astype(weight_dtype) for w in (w1, w2, w3, wf))

    def resident(arr):
        # Full-array block, same block index every grid step -> loaded once,
        # stays VMEM-resident across the whole batch grid.
        return pl.BlockSpec(arr.shape, lambda i: (0, 0))

    grid = (pB // tb,)
    out = pl.pallas_call(
        functools.partial(actor_kernel, approx_sigmoid=approx_sigmoid),
        out_shape=jax.ShapeDtypeStruct((pB, out_dim), jnp.float32),
        grid_spec=pltpu.PrefetchScalarGridSpec(
            num_scalar_prefetch=0,
            grid=grid,
            in_specs=[
                pl.BlockSpec((tb, in_dim), lambda i: (i, 0)),   # x: tiled
                resident(w1c), resident(b1),
                resident(w2c), resident(b2),
                resident(w3c), resident(b3),
                resident(wfc), resident(bf),
                resident(low_f), resident(scale),
            ],
            out_specs=pl.BlockSpec((tb, out_dim), lambda i: (i, 0)),
        ),
        compiler_params=pltpu.CompilerParams(
            # Batch tiles are independent -> shard across TCs on v7x.
            dimension_semantics=("parallel",),
        ),
    )(x, w1c, b1, w2c, b2, w3c, b3, wfc, bf, low_f, scale)

    return out[:B]


def init_actor_params(key, input_dim, hidden_dim, output_dim):
    """Deterministic init mirroring the PyTorch module (weights stored [in, out])."""
    def linear_init(k, fan_in, fan_out):
        kw, kb = jax.random.split(k)
        bound = 1.0 / jnp.sqrt(fan_in)
        w = jax.random.uniform(kw, (fan_in, fan_out), jnp.float32, -bound, bound)
        b = jax.random.uniform(kb, (1, fan_out), jnp.float32, -bound, bound)
        return w, b

    k1, k2, k3, kf = jax.random.split(key, 4)
    l1 = linear_init(k1, input_dim, hidden_dim)
    l2 = linear_init(k2, hidden_dim, hidden_dim)
    l3 = linear_init(k3, hidden_dim, hidden_dim)

    kfw, kfb = jax.random.split(kf)
    wf = jax.random.uniform(kfw, (hidden_dim, output_dim), jnp.float32,
                            -WEIGHTS_FINAL_INIT, WEIGHTS_FINAL_INIT)
    bf = jax.random.uniform(kfb, (1, output_dim), jnp.float32,
                            -BIAS_FINAL_INIT, BIAS_FINAL_INIT)
    return (l1, l2, l3, (wf, bf))


def actor_reference(x, params, low, high):
    """Pure-JAX reference (module semantics, f32 everywhere)."""
    (w1, b1), (w2, b2), (w3, b3), (wf, bf) = params
    h = jax.nn.silu(x @ w1 + b1)
    h = jax.nn.silu(h @ w2 + b2)
    h = jax.nn.silu(h @ w3 + b3)
    z = h @ wf + bf
    return jax.nn.sigmoid(z) * (high - low) + low


if __name__ == "__main__":
    # Small but non-degenerate shapes: hidden_dim lane-aligned (multiple of
    # 128, module default is 512), batch sized so the grid has >1 step and the
    # padding path is exercised (40 rows, 16-row tiles -> grid of 3).
    batch = 40
    input_dim = 24
    hidden_dim = 128
    output_dim = 4   # action_space.shape[0]

    key = jax.random.PRNGKey(0)
    k_x, k_p = jax.random.split(key)

    x = jax.random.normal(k_x, (batch, input_dim), jnp.float32)
    params = init_actor_params(k_p, input_dim, hidden_dim, output_dim)

    # action_space bounds (e.g. Box(-2, 2)), shaped [1, output_dim].
    low = jnp.full((1, output_dim), -2.0, jnp.float32)
    high = jnp.full((1, output_dim), 2.0, jnp.float32)

    ref = actor_reference(x, params, low, high)

    # 1) Exact path (f32 weights, exact sigmoid): tight check vs. the reference.
    out_exact = actor_forward(x, params, low, high, block_b=16,
                              weight_dtype=jnp.float32, approx_sigmoid=False)
    out_exact = jax.block_until_ready(out_exact)
    assert out_exact.shape == (batch, output_dim)
    assert jnp.allclose(out_exact, ref, atol=3e-5, rtol=3e-5), (out_exact, ref)

    # 2) Optimized path (bf16 weights on the MXU + approx-reciprocal sigmoid):
    #    same semantics within bf16/approx-EUP tolerance of the 4-unit range.
    out_fast = actor_forward(x, params, low, high, block_b=16)
    out_fast = jax.block_until_ready(out_fast)
    assert out_fast.shape == (batch, output_dim)
    assert jnp.allclose(out_fast, ref, atol=3e-2, rtol=3e-2), (out_fast, ref)

    print("KERNEL_OK")
</pallas_src>

<mosaic_0001>
module attributes {stable_mosaic.version = 11 : i64} {
  func.func @actor_kernel(%arg0: i32, %arg1: memref<16x24xf32, #tpu.memory_space<vmem>>, %arg2: memref<24x128xf32, #tpu.memory_space<vmem>>, %arg3: memref<1x128xf32, #tpu.memory_space<vmem>>, %arg4: memref<128x128xf32, #tpu.memory_space<vmem>>, %arg5: memref<1x128xf32, #tpu.memory_space<vmem>>, %arg6: memref<128x128xf32, #tpu.memory_space<vmem>>, %arg7: memref<1x128xf32, #tpu.memory_space<vmem>>, %arg8: memref<128x4xf32, #tpu.memory_space<vmem>>, %arg9: memref<1x4xf32, #tpu.memory_space<vmem>>, %arg10: memref<1x4xf32, #tpu.memory_space<vmem>>, %arg11: memref<1x4xf32, #tpu.memory_space<vmem>>, %arg12: memref<16x4xf32, #tpu.memory_space<vmem>>) attributes {dimension_semantics = [#tpu.dimension_semantics<parallel>], iteration_bounds = array<i64: 3>, scalar_prefetch = 0 : i64, scratch_operands = 0 : i64, tpu.core_type = #tpu.core_type<tc>, window_params = [{transform_indices = @transform_0, window_bounds = array<i64: 16, 24>}, {pipeline_mode = #tpu.pipeline_mode<synchronous>, transform_indices = @transform_1, window_bounds = array<i64: 24, 128>}, {pipeline_mode = #tpu.pipeline_mode<synchronous>, transform_indices = @transform_2, window_bounds = array<i64: 1, 128>}, {pipeline_mode = #tpu.pipeline_mode<synchronous>, transform_indices = @transform_3, window_bounds = array<i64: 128, 128>}, {pipeline_mode = #tpu.pipeline_mode<synchronous>, transform_indices = @transform_4, window_bounds = array<i64: 1, 128>}, {pipeline_mode = #tpu.pipeline_mode<synchronous>, transform_indices = @transform_5, window_bounds = array<i64: 128, 128>}, {pipeline_mode = #tpu.pipeline_mode<synchronous>, transform_indices = @transform_6, window_bounds = array<i64: 1, 128>}, {pipeline_mode = #tpu.pipeline_mode<synchronous>, transform_indices = @transform_7, window_bounds = array<i64: 128, 4>}, {pipeline_mode = #tpu.pipeline_mode<synchronous>, transform_indices = @transform_8, window_bounds = array<i64: 1, 4>}, {pipeline_mode = #tpu.pipeline_mode<synchronous>, transform_indices = @transform_9, window_bounds = array<i64: 1, 4>}, {pipeline_mode = #tpu.pipeline_mode<synchronous>, transform_indices = @transform_10, window_bounds = array<i64: 1, 4>}, {transform_indices = @transform_11, window_bounds = array<i64: 16, 4>}]} {
    %c0 = arith.constant 0 : index
    %c0_0 = arith.constant 0 : index
    %0 = vector.load %arg1[%c0, %c0_0] : memref<16x24xf32, #tpu.memory_space<vmem>>, vector<16x24xf32>
    %c0_1 = arith.constant 0 : index
    %c0_2 = arith.constant 0 : index
    %1 = vector.load %arg2[%c0_1, %c0_2] : memref<24x128xf32, #tpu.memory_space<vmem>>, vector<24x128xf32>
    %cst = arith.constant dense<0.000000e+00> : vector<16x128xf32>
    %2 = tpu.matmul %0, %1, %cst {dimension_numbers = #tpu.dot_dimension_numbers<[1], [0], [0], [1], [0, 0, 1, 1], [], []>} : vector<16x24xf32>, vector<24x128xf32>, vector<16x128xf32> -> vector<16x128xf32>
    %c0_3 = arith.constant 0 : index
    %c0_4 = arith.constant 0 : index
    %3 = vector.load %arg3[%c0_3, %c0_4] : memref<1x128xf32, #tpu.memory_space<vmem>>, vector<1x128xf32>
    %4 = vector.broadcast %3 : vector<1x128xf32> to vector<16x128xf32>
    %5 = arith.addf %2, %4 : vector<16x128xf32>
    %6 = arith.negf %5 : vector<16x128xf32>
    %7 = math.exp %6 : vector<16x128xf32>
    %cst_5 = arith.constant 1.000000e+00 : f32
    %8 = vector.broadcast %cst_5 : f32 to vector<16x128xf32>
    %9 = arith.addf %8, %7 : vector<16x128xf32>
    %10 = arith.divf %8, %9 : vector<16x128xf32>
    %11 = arith.mulf %5, %10 : vector<16x128xf32>
    %c0_6 = arith.constant 0 : index
    %c0_7 = arith.constant 0 : index
    %12 = vector.load %arg4[%c0_6, %c0_7] : memref<128x128xf32, #tpu.memory_space<vmem>>, vector<128x128xf32>
    %cst_8 = arith.constant dense<0.000000e+00> : vector<16x128xf32>
    %13 = tpu.matmul %11, %12, %cst_8 {dimension_numbers = #tpu.dot_dimension_numbers<[1], [0], [0], [1], [0, 0, 1, 1], [], []>} : vector<16x128xf32>, vector<128x128xf32>, vector<16x128xf32> -> vector<16x128xf32>
    %c0_9 = arith.constant 0 : index
    %c0_10 = arith.constant 0 : index
    %14 = vector.load %arg5[%c0_9, %c0_10] : memref<1x128xf32, #tpu.memory_space<vmem>>, vector<1x128xf32>
    %15 = vector.broadcast %14 : vector<1x128xf32> to vector<16x128xf32>
    %16 = arith.addf %13, %15 : vector<16x128xf32>
    %17 = arith.negf %16 : vector<16x128xf32>
    %18 = math.exp %17 : vector<16x128xf32>
    %cst_11 = arith.constant 1.000000e+00 : f32
    %19 = vector.broadcast %cst_11 : f32 to vector<16x128xf32>
    %20 = arith.addf %19, %18 : vector<16x128xf32>
    %21 = arith.divf %19, %20 : vector<16x128xf32>
    %22 = arith.mulf %16, %21 : vector<16x128xf32>
    %c0_12 = arith.constant 0 : index
    %c0_13 = arith.constant 0 : index
    %23 = vector.load %arg6[%c0_12, %c0_13] : memref<128x128xf32, #tpu.memory_space<vmem>>, vector<128x128xf32>
    %cst_14 = arith.constant dense<0.000000e+00> : vector<16x128xf32>
    %24 = tpu.matmul %22, %23, %cst_14 {dimension_numbers = #tpu.dot_dimension_numbers<[1], [0], [0], [1], [0, 0, 1, 1], [], []>} : vector<16x128xf32>, vector<128x128xf32>, vector<16x128xf32> -> vector<16x128xf32>
    %c0_15 = arith.constant 0 : index
    %c0_16 = arith.constant 0 : index
    %25 = vector.load %arg7[%c0_15, %c0_16] : memref<1x128xf32, #tpu.memory_space<vmem>>, vector<1x128xf32>
    %26 = vector.broadcast %25 : vector<1x128xf32> to vector<16x128xf32>
    %27 = arith.addf %24, %26 : vector<16x128xf32>
    %28 = arith.negf %27 : vector<16x128xf32>
    %29 = math.exp %28 : vector<16x128xf32>
    %cst_17 = arith.constant 1.000000e+00 : f32
    %30 = vector.broadcast %cst_17 : f32 to vector<16x128xf32>
    %31 = arith.addf %30, %29 : vector<16x128xf32>
    %32 = arith.divf %30, %31 : vector<16x128xf32>
    %33 = arith.mulf %27, %32 : vector<16x128xf32>
    %c0_18 = arith.constant 0 : index
    %c0_19 = arith.constant 0 : index
    %34 = vector.load %arg8[%c0_18, %c0_19] : memref<128x4xf32, #tpu.memory_space<vmem>>, vector<128x4xf32>
    %cst_20 = arith.constant dense<0.000000e+00> : vector<16x4xf32>
    %35 = tpu.matmul %33, %34, %cst_20 {dimension_numbers = #tpu.dot_dimension_numbers<[1], [0], [0], [1], [0, 0, 1, 1], [], []>} : vector<16x128xf32>, vector<128x4xf32>, vector<16x4xf32> -> vector<16x4xf32>
    %c0_21 = arith.constant 0 : index
    %c0_22 = arith.constant 0 : index
    %36 = vector.load %arg9[%c0_21, %c0_22] : memref<1x4xf32, #tpu.memory_space<vmem>>, vector<1x4xf32>
    %37 = vector.broadcast %36 : vector<1x4xf32> to vector<16x4xf32>
    %38 = arith.addf %35, %37 : vector<16x4xf32>
    %39 = arith.negf %38 : vector<16x4xf32>
    %40 = math.exp %39 : vector<16x4xf32>
    %cst_23 = arith.constant 1.000000e+00 : f32
    %41 = vector.broadcast %cst_23 : f32 to vector<16x4xf32>
    %42 = arith.addf %41, %40 : vector<16x4xf32>
    %43 = arith.divf %41, %42 : vector<16x4xf32>
    %c0_24 = arith.constant 0 : index
    %c0_25 = arith.constant 0 : index
    %44 = vector.load %arg11[%c0_24, %c0_25] : memref<1x4xf32, #tpu.memory_space<vmem>>, vector<1x4xf32>
    %45 = vector.broadcast %44 : vector<1x4xf32> to vector<16x4xf32>
    %46 = arith.mulf %43, %45 : vector<16x4xf32>
    %c0_26 = arith.constant 0 : index
    %c0_27 = arith.constant 0 : index
    %47 = vector.load %arg10[%c0_26, %c0_27] : memref<1x4xf32, #tpu.memory_space<vmem>>, vector<1x4xf32>
    %48 = vector.broadcast %47 : vector<1x4xf32> to vector<16x4xf32>
    %49 = arith.addf %46, %48 : vector<16x4xf32>
    %c0_28 = arith.constant 0 : index
    %c0_29 = arith.constant 0 : index
    %50 = vector.load %arg12[%c0_28, %c0_29] : memref<16x4xf32, #tpu.memory_space<vmem>>, vector<16x4xf32>
    tpu.vector_store %arg12[%c0_28, %c0_29], %49 {strides = array<i32>} : memref<16x4xf32, #tpu.memory_space<vmem>>, vector<16x4xf32>,
    return
  }
  func.func @transform_0(%arg0: i32) -> (i32, i32) {
    %c0_i32 = arith.constant 0 : i32
    %c0_i32_0 = arith.constant 0 : i32
    return %arg0, %c0_i32 : i32, i32
  }
  func.func @transform_1(%arg0: i32) -> (i32, i32) {
    %c0_i32 = arith.constant 0 : i32
    %c0_i32_0 = arith.constant 0 : i32
    %c0_i32_1 = arith.constant 0 : i32
    return %c0_i32, %c0_i32_0 : i32, i32
  }
  func.func @transform_2(%arg0: i32) -> (i32, i32) {
    %c0_i32 = arith.constant 0 : i32
    %c0_i32_0 = arith.constant 0 : i32
    %c0_i32_1 = arith.constant 0 : i32
    return %c0_i32, %c0_i32_0 : i32, i32
  }
  func.func @transform_3(%arg0: i32) -> (i32, i32) {
    %c0_i32 = arith.constant 0 : i32
    %c0_i32_0 = arith.constant 0 : i32
    %c0_i32_1 = arith.constant 0 : i32
    return %c0_i32, %c0_i32_0 : i32, i32
  }
  func.func @transform_4(%arg0: i32) -> (i32, i32) {
    %c0_i32 = arith.constant 0 : i32
    %c0_i32_0 = arith.constant 0 : i32
    %c0_i32_1 = arith.constant 0 : i32
    return %c0_i32, %c0_i32_0 : i32, i32
  }
  func.func @transform_5(%arg0: i32) -> (i32, i32) {
    %c0_i32 = arith.constant 0 : i32
    %c0_i32_0 = arith.constant 0 : i32
    %c0_i32_1 = arith.constant 0 : i32
    return %c0_i32, %c0_i32_0 : i32, i32
  }
  func.func @transform_6(%arg0: i32) -> (i32, i32) {
    %c0_i32 = arith.constant 0 : i32
    %c0_i32_0 = arith.constant 0 : i32
    %c0_i32_1 = arith.constant 0 : i32
    return %c0_i32, %c0_i32_0 : i32, i32
  }
  func.func @transform_7(%arg0: i32) -> (i32, i32) {
    %c0_i32 = arith.constant 0 : i32
    %c0_i32_0 = arith.constant 0 : i32
    %c0_i32_1 = arith.constant 0 : i32
    return %c0_i32, %c0_i32_0 : i32, i32
  }
  func.func @transform_8(%arg0: i32) -> (i32, i32) {
    %c0_i32 = arith.constant 0 : i32
    %c0_i32_0 = arith.constant 0 : i32
    %c0_i32_1 = arith.constant 0 : i32
    return %c0_i32, %c0_i32_0 : i32, i32
  }
  func.func @transform_9(%arg0: i32) -> (i32, i32) {
    %c0_i32 = arith.constant 0 : i32
    %c0_i32_0 = arith.constant 0 : i32
    %c0_i32_1 = arith.constant 0 : i32
    return %c0_i32, %c0_i32_0 : i32, i32
  }
  func.func @transform_10(%arg0: i32) -> (i32, i32) {
    %c0_i32 = arith.constant 0 : i32
    %c0_i32_0 = arith.constant 0 : i32
    %c0_i32_1 = arith.constant 0 : i32
    return %c0_i32, %c0_i32_0 : i32, i32
  }
  func.func @transform_11(%arg0: i32) -> (i32, i32) {
    %c0_i32 = arith.constant 0 : i32
    %c0_i32_0 = arith.constant 0 : i32
    return %arg0, %c0_i32 : i32, i32
  }
}

</mosaic_0001>

<llo_original>
// kernel: tpu_custom_call.1
$region0: #{tpu_custom_call.1}
  #allocation0 [shape = 'u32[]', space=smem, size = 0x4, offset = 0x4, fixed_abs, tag = 'smem constant byte address 0x4 - core index']
  #allocation1 [shape = 'u32[144,128]{1,0:T(1,128)}', space=vmem, size = 0x12000, scoped, tag = 'internal scratch']
  %s0 = inlined_call_operand.vmem [shape: f32[48,24], index: 0, kind: input, shape index: {}]
  %s1 = inlined_call_operand.vmem [shape: f32[24,128], index: 1, kind: input, shape index: {}]
  %s2 = inlined_call_operand.vmem [shape: f32[1,128], index: 2, kind: input, shape index: {}]
  %s3 = inlined_call_operand.vmem [shape: f32[128,128], index: 3, kind: input, shape index: {}]
  %s4 = inlined_call_operand.vmem [shape: f32[1,128], index: 4, kind: input, shape index: {}]
  %s5 = inlined_call_operand.hbm [shape: f32[128,128], index: 5, kind: input, shape index: {}]
  %s6 = inlined_call_operand.vmem [shape: f32[1,128], index: 6, kind: input, shape index: {}]
  %s7 = inlined_call_operand.vmem [shape: f32[128,4], index: 7, kind: input, shape index: {}]
  %s8 = inlined_call_operand.vmem [shape: f32[1,4], index: 8, kind: input, shape index: {}]
  %s9 = inlined_call_operand.vmem [shape: f32[1,4], index: 9, kind: input, shape index: {}]
  %s10 = inlined_call_operand.vmem [shape: f32[1,4], index: 10, kind: input, shape index: {}]
  %s11 = inlined_call_operand.vmem [shape: f32[48,4], index: 11, kind: output, shape index: {}]
  %s12 = sld [smem:[#allocation0]]
  $region81: #{tpu_custom_call.1} parent=0
    _
  %s14 = ssub.s32 1, %s12
  %s15 = scalar_select 0, %s14, %s12
  $region1: #{tpu_custom_call.1} parent=0
    #allocation2 [shape = 'u8[65536]{0}', space=vmem, size = 0x10000, scoped, tag = 'input window, operand 5, single buffered']
    #allocation3 [shape = 's32[2]{0}', space=sflag, size = 0x8, scoped, tag = 'scoped memory for tpu_custom_call.1']
    %16 = vsyncpa [#allocation3], 0
    loop: start=0, step=1, limit=5
    $region2: #{tpu_custom_call.1} parent=1 // loop_pre_header
      _
    $region3: #{tpu_custom_call.1} parent=1 // loop_header
      %s18 = sphi 0, %s22
      %p19 = scmp.ge.s32.totalorder %s18, 5
      %s28 = sphi 0, %s30
      %s31 = sphi 0, %s28
      %s32 = sphi 0, %s31
      %s48 = sphi 0, %s32
      %s52 = sphi 0, %s52
      %s54 = sphi 0, %s52
      %s55 = sphi 0, %s54
      %s69 = sphi 0, %s55
      %s73 = sphi 0, %s73
      %s75 = sphi 0, %s73
      %s76 = sphi 0, %s75
      %s90 = sphi 0, %s76
      %s94 = sphi 0, %s94
      %s96 = sphi 0, %s94
      %s97 = sphi 0, %s96
      %s111 = sphi 0, %s97
      %s115 = sphi 0, %s115
      %s117 = sphi 0, %s115
      %s118 = sphi 0, %s117
      %s132 = sphi 0, %s118
      %s136 = sphi 0, %s136
      %s138 = sphi 0, %s136
      %s139 = sphi 0, %s138
      %s153 = sphi 0, %s139
      %s157 = sphi 0, %s157
      %s159 = sphi 0, %s157
      %s160 = sphi 0, %s159
      %s174 = sphi 0, %s160
      %s178 = sphi 0, %s178
      %s180 = sphi 0, %s178
      %s181 = sphi 0, %s180
      %s195 = sphi 0, %s181
      %s199 = sphi 0, %s199
      %s201 = sphi 0, %s199
      %s202 = sphi 0, %s201
      %s216 = sphi 0, %s202
      %s220 = sphi 0, %s220
      %s222 = sphi 0, %s220
      %s223 = sphi 0, %s222
      %s237 = sphi 0, %s223
      %s241 = sphi 0, %s241
      %s243 = sphi 0, %s241
      %s244 = sphi 0, %s243
      %s258 = sphi 0, %s244
      %s264 = sphi 0, %s266
      %s267 = sphi 0, %s264
      %s268 = sphi 0, %s267
      %s284 = sphi 0, %s268
    $region4: #{tpu_custom_call.1} parent=1 // loop_header_branch
      %21 = sbr.rel (%p19) target = $region8
    $region5: #{tpu_custom_call.1} parent=1 // loop_body
      %s23 = ssub.s32 %s18, 1
      %s24 = ssub.s32 %s18, 2
      %s25 = sadd.s32 %s18, 1
      %s26 = ssub.s32 %s18, %s25
      %p27 = scmp.eq.s32.totalorder %s26, 0
      %s29 = sadd.s32 %s28, 1
      %s30 = scalar_select %p27, %s28, %s29
      %p33 = pneg %p27
      %p34 = scmp.eq.s32.totalorder %s18, 2
      %p35 = por %p33, %p34
      %p36 = scmp.ne.s32.totalorder %s28, %s31
      %p37 = scmp.eq.s32.totalorder %s18, 0
      %p38 = por %p36, %p37
      %p39 = scmp.ne.s32.totalorder %s28, %s31
      %p40 = scmp.eq.s32.totalorder %s23, 2
      %p41 = por %p39, %p40
      %p42 = scmp.ne.s32.totalorder %s31, %s32
      %p43 = scmp.eq.s32.totalorder %s23, 0
      %p44 = por %p42, %p43
      %p45 = scmp.ne.s32.totalorder %s31, %s32
      %p46 = scmp.eq.s32.totalorder %s24, 2
      %p47 = por %p45, %p46
      %p49 = scmp.ne.s32.totalorder %s32, %s48
      %p50 = scmp.eq.s32.totalorder %s24, 0
      %p51 = por %p49, %p50
      %s53 = sadd.s32 %s52, 1
      %p56 = scmp.eq.s32.totalorder %s18, 2
      %p57 = scmp.ne.s32.totalorder %s52, %s54
      %p58 = scmp.eq.s32.totalorder %s18, 0
      %p59 = por %p57, %p58
      %p60 = scmp.ne.s32.totalorder %s52, %s54
      %p61 = scmp.eq.s32.totalorder %s23, 2
      %p62 = por %p60, %p61
      %p63 = scmp.ne.s32.totalorder %s54, %s55
      %p64 = scmp.eq.s32.totalorder %s23, 0
      %p65 = por %p63, %p64
      %p66 = scmp.ne.s32.totalorder %s54, %s55
      %p67 = scmp.eq.s32.totalorder %s24, 2
      %p68 = por %p66, %p67
      %p70 = scmp.ne.s32.totalorder %s55, %s69
      %p71 = scmp.eq.s32.totalorder %s24, 0
      %p72 = por %p70, %p71
      %s74 = sadd.s32 %s73, 1
      %p77 = scmp.eq.s32.totalorder %s18, 2
      %p78 = scmp.ne.s32.totalorder %s73, %s75
      %p79 = scmp.eq.s32.totalorder %s18, 0
      %p80 = por %p78, %p79
      %p81 = scmp.ne.s32.totalorder %s73, %s75
      %p82 = scmp.eq.s32.totalorder %s23, 2
      %p83 = por %p81, %p82
      %p84 = scmp.ne.s32.totalorder %s75, %s76
      %p85 = scmp.eq.s32.totalorder %s23, 0
      %p86 = por %p84, %p85
      %p87 = scmp.ne.s32.totalorder %s75, %s76
      %p88 = scmp.eq.s32.totalorder %s24, 2
      %p89 = por %p87, %p88
      %p91 = scmp.ne.s32.totalorder %s76, %s90
      %p92 = scmp.eq.s32.totalorder %s24, 0
      %p93 = por %p91, %p92
      %s95 = sadd.s32 %s94, 1
      %p98 = scmp.eq.s32.totalorder %s18, 2
      %p99 = scmp.ne.s32.totalorder %s94, %s96
      %p100 = scmp.eq.s32.totalorder %s18, 0
      %p101 = por %p99, %p100
      %p102 = scmp.ne.s32.totalorder %s94, %s96
      %p103 = scmp.eq.s32.totalorder %s23, 2
      %p104 = por %p102, %p103
      %p105 = scmp.ne.s32.totalorder %s96, %s97
      %p106 = scmp.eq.s32.totalorder %s23, 0
      %p107 = por %p105, %p106
      %p108 = scmp.ne.s32.totalorder %s96, %s97
      %p109 = scmp.eq.s32.totalorder %s24, 2
      %p110 = por %p108, %p109
      %p112 = scmp.ne.s32.totalorder %s97, %s111
      %p113 = scmp.eq.s32.totalorder %s24, 0
      %p114 = por %p112, %p113
      %s116 = sadd.s32 %s115, 1
      %p119 = scmp.eq.s32.totalorder %s18, 2
      %p120 = scmp.ne.s32.totalorder %s115, %s117
      %p121 = scmp.eq.s32.totalorder %s18, 0
      %p122 = por %p120, %p121
      %p123 = scmp.ne.s32.totalorder %s115, %s117
      %p124 = scmp.eq.s32.totalorder %s23, 2
      %p125 = por %p123, %p124
      %p126 = scmp.ne.s32.totalorder %s117, %s118
      %p127 = scmp.eq.s32.totalorder %s23, 0
      %p128 = por %p126, %p127
      %p129 = scmp.ne.s32.totalorder %s117, %s118
      %p130 = scmp.eq.s32.totalorder %s24, 2
      %p131 = por %p129, %p130
      %p133 = scmp.ne.s32.totalorder %s118, %s132
      %p134 = scmp.eq.s32.totalorder %s24, 0
      %p135 = por %p133, %p134
      %s137 = sadd.s32 %s136, 1
      %p140 = scmp.eq.s32.totalorder %s18, 2
      %p141 = scmp.ne.s32.totalorder %s136, %s138
      %p142 = scmp.eq.s32.totalorder %s18, 0
      %p143 = por %p141, %p142
      %p144 = scmp.ne.s32.totalorder %s136, %s138
      %p145 = scmp.eq.s32.totalorder %s23, 2
      %p146 = por %p144, %p145
      %p147 = scmp.ne.s32.totalorder %s138, %s139
      %p148 = scmp.eq.s32.totalorder %s23, 0
      %p149 = por %p147, %p148
      %p150 = scmp.ne.s32.totalorder %s138, %s139
      %p151 = scmp.eq.s32.totalorder %s24, 2
      %p152 = por %p150, %p151
      %p154 = scmp.ne.s32.totalorder %s139, %s153
      %p155 = scmp.eq.s32.totalorder %s24, 0
      %p156 = por %p154, %p155
      %s158 = sadd.s32 %s157, 1
      %p161 = scmp.eq.s32.totalorder %s18, 2
      %p162 = scmp.ne.s32.totalorder %s157, %s159
      %p163 = scmp.eq.s32.totalorder %s18, 0
      %p164 = por %p162, %p163
      %p165 = scmp.ne.s32.totalorder %s157, %s159
      %p166 = scmp.eq.s32.totalorder %s23, 2
      %p167 = por %p165, %p166
      %p168 = scmp.ne.s32.totalorder %s159, %s160
      %p169 = scmp.eq.s32.totalorder %s23, 0
      %p170 = por %p168, %p169
      %p171 = scmp.ne.s32.totalorder %s159, %s160
      %p172 = scmp.eq.s32.totalorder %s24, 2
      %p173 = por %p171, %p172
      %p175 = scmp.ne.s32.totalorder %s160, %s174
      %p176 = scmp.eq.s32.totalorder %s24, 0
      %p177 = por %p175, %p176
      %s179 = sadd.s32 %s178, 1
      %p182 = scmp.eq.s32.totalorder %s18, 2
      %p183 = scmp.ne.s32.totalorder %s178, %s180
      %p184 = scmp.eq.s32.totalorder %s18, 0
      %p185 = por %p183, %p184
      %p186 = scmp.ne.s32.totalorder %s178, %s180
      %p187 = scmp.eq.s32.totalorder %s23, 2
      %p188 = por %p186, %p187
      %p189 = scmp.ne.s32.totalorder %s180, %s181
      %p190 = scmp.eq.s32.totalorder %s23, 0
      %p191 = por %p189, %p190
      %p192 = scmp.ne.s32.totalorder %s180, %s181
      %p193 = scmp.eq.s32.totalorder %s24, 2
      %p194 = por %p192, %p193
      %p196 = scmp.ne.s32.totalorder %s181, %s195
      %p197 = scmp.eq.s32.totalorder %s24, 0
      %p198 = por %p196, %p197
      %s200 = sadd.s32 %s199, 1
      %p203 = scmp.eq.s32.totalorder %s18, 2
      %p204 = scmp.ne.s32.totalorder %s199, %s201
      %p205 = scmp.eq.s32.totalorder %s18, 0
      %p206 = por %p204, %p205
      %p207 = scmp.ne.s32.totalorder %s199, %s201
      %p208 = scmp.eq.s32.totalorder %s23, 2
      %p209 = por %p207, %p208
      %p210 = scmp.ne.s32.totalorder %s201, %s202
      %p211 = scmp.eq.s32.totalorder %s23, 0
      %p212 = por %p210, %p211
      %p213 = scmp.ne.s32.totalorder %s201, %s202
      %p214 = scmp.eq.s32.totalorder %s24, 2
      %p215 = por %p213, %p214
      %p217 = scmp.ne.s32.totalorder %s202, %s216
      %p218 = scmp.eq.s32.totalorder %s24, 0
      %p219 = por %p217, %p218
      %s221 = sadd.s32 %s220, 1
      %p224 = scmp.eq.s32.totalorder %s18, 2
      %p225 = scmp.ne.s32.totalorder %s220, %s222
      %p226 = scmp.eq.s32.totalorder %s18, 0
      %p227 = por %p225, %p226
      %p228 = scmp.ne.s32.totalorder %s220, %s222
      %p229 = scmp.eq.s32.totalorder %s23, 2
      %p230 = por %p228, %p229
      %p231 = scmp.ne.s32.totalorder %s222, %s223
      %p232 = scmp.eq.s32.totalorder %s23, 0
      %p233 = por %p231, %p232
      %p234 = scmp.ne.s32.totalorder %s222, %s223
      %p235 = scmp.eq.s32.totalorder %s24, 2
      %p236 = por %p234, %p235
      %p238 = scmp.ne.s32.totalorder %s223, %s237
      %p239 = scmp.eq.s32.totalorder %s24, 0
      %p240 = por %p238, %p239
      %s242 = sadd.s32 %s241, 1
      %p245 = scmp.eq.s32.totalorder %s18, 2
      %p246 = scmp.ne.s32.totalorder %s241, %s243
      %p247 = scmp.eq.s32.totalorder %s18, 0
      %p248 = por %p246, %p247
      %p249 = scmp.ne.s32.totalorder %s241, %s243
      %p250 = scmp.eq.s32.totalorder %s23, 2
      %p251 = por %p249, %p250
      %p252 = scmp.ne.s32.totalorder %s243, %s244
      %p253 = scmp.eq.s32.totalorder %s23, 0
      %p254 = por %p252, %p253
      %p255 = scmp.ne.s32.totalorder %s243, %s244
      %p256 = scmp.eq.s32.totalorder %s24, 2
      %p257 = por %p255, %p256
      %p259 = scmp.ne.s32.totalorder %s244, %s258
      %p260 = scmp.eq.s32.totalorder %s24, 0
      %p261 = por %p259, %p260
      %s262 = ssub.s32 %s18, %s25
      %p263 = scmp.eq.s32.totalorder %s262, 0
      %s265 = sadd.s32 %s264, 1
      %s266 = scalar_select %p263, %s264, %s265
      %p269 = pneg %p263
      %p270 = scmp.eq.s32.totalorder %s18, 2
      %p271 = por %p269, %p270
      %p272 = scmp.ne.s32.totalorder %s264, %s267
      %p273 = scmp.eq.s32.totalorder %s18, 0
      %p274 = por %p272, %p273
      %p275 = scmp.ne.s32.totalorder %s264, %s267
      %p276 = scmp.eq.s32.totalorder %s23, 2
      %p277 = por %p275, %p276
      %p278 = scmp.ne.s32.totalorder %s267, %s268
      %p279 = scmp.eq.s32.totalorder %s23, 0
      %p280 = por %p278, %p279
      %p281 = scmp.ne.s32.totalorder %s267, %s268
      %p282 = scmp.eq.s32.totalorder %s24, 2
      %p283 = por %p281, %p282
      %p285 = scmp.ne.s32.totalorder %s268, %s284
      %p286 = scmp.eq.s32.totalorder %s24, 0
      %p287 = por %p285, %p286
      %p288 = scmp.le.s32.totalorder 1, %s18
      %p289 = scmp.lt.s32.totalorder %s18, 4
      %p290 = pnand %p288, %p289
      %p291 = pneg %p290
      // Predicated region
      $region9: #{tpu_custom_call.1} parent=5 // pred_check
        _
      $region10: #{tpu_custom_call.1} parent=5 // pred_check_branch
        %293 = sbr.rel (%p290) target = $region12
      $region11: #{tpu_custom_call.1} parent=5 // pred_region
        %s294 = ssub.s32 %s18, 1
        // Predicated region
        $region13: #{tpu_custom_call.1} parent=11 // pred_check
          %p295 = pneg %p65
        $region14: #{tpu_custom_call.1} parent=11 // pred_check_branch
          %297 = sbr.rel (%p295) target = $region16
        $region15: #{tpu_custom_call.1} parent=11 // pred_region
          _
        $region16: #{tpu_custom_call.1} parent=11 // pred_fallthru
          _
        // Predicated region
        $region17: #{tpu_custom_call.1} parent=11 // pred_check
          %p298 = pneg %p86
        $region18: #{tpu_custom_call.1} parent=11 // pred_check_branch
          %300 = sbr.rel (%p298) target = $region20
        $region19: #{tpu_custom_call.1} parent=11 // pred_region
          _
        $region20: #{tpu_custom_call.1} parent=11 // pred_fallthru
          _
        // Predicated region
        $region21: #{tpu_custom_call.1} parent=11 // pred_check
          %p301 = pneg %p107
        $region22: #{tpu_custom_call.1} parent=11 // pred_check_branch
          %303 = sbr.rel (%p301) target = $region24
        $region23: #{tpu_custom_call.1} parent=11 // pred_region
          _
        $region24: #{tpu_custom_call.1} parent=11 // pred_fallthru
          _
        // Predicated region
        $region25: #{tpu_custom_call.1} parent=11 // pred_check
          %p304 = pneg %p128
        $region26: #{tpu_custom_call.1} parent=11 // pred_check_branch
          %306 = sbr.rel (%p304) target = $region28
        $region27: #{tpu_custom_call.1} parent=11 // pred_region
          _
        $region28: #{tpu_custom_call.1} parent=11 // pred_fallthru
          _
        // Predicated region
        $region29: #{tpu_custom_call.1} parent=11 // pred_check
          %p307 = pneg %p149
        $region30: #{tpu_custom_call.1} parent=11 // pred_check_branch
          %309 = sbr.rel (%p307) target = $region32
        $region31: #{tpu_custom_call.1} parent=11 // pred_region
          %s311 = ssub.s32 2048, 2048
          %312 = vsyncadd [#allocation3], %s311
          %s313 = sshll.u32 [#allocation2], 4
          %s314 = int_to_ptr.vmem [resolvable:$true] %s313
          %319 = dma.hbm_to_vmem [thread:$0]  %s5, 2048, %s314, [#allocation3], 128, 128, 8
        $region32: #{tpu_custom_call.1} parent=11 // pred_fallthru
          _
        // Predicated region
        $region33: #{tpu_custom_call.1} parent=11 // pred_check
          %p320 = pneg %p170
        $region34: #{tpu_custom_call.1} parent=11 // pred_check_branch
          %322 = sbr.rel (%p320) target = $region36
        $region35: #{tpu_custom_call.1} parent=11 // pred_region
          _
        $region36: #{tpu_custom_call.1} parent=11 // pred_fallthru
          _
        // Predicated region
        $region37: #{tpu_custom_call.1} parent=11 // pred_check
          %p323 = pneg %p191
        $region38: #{tpu_custom_call.1} parent=11 // pred_check_branch
          %325 = sbr.rel (%p323) target = $region40
        $region39: #{tpu_custom_call.1} parent=11 // pred_region
          _
        $region40: #{tpu_custom_call.1} parent=11 // pred_fallthru
          _
        // Predicated region
        $region41: #{tpu_custom_call.1} parent=11 // pred_check
          %p326 = pneg %p212
        $region42: #{tpu_custom_call.1} parent=11 // pred_check_branch
          %328 = sbr.rel (%p326) target = $region44
        $region43: #{tpu_custom_call.1} parent=11 // pred_region
          _
        $region44: #{tpu_custom_call.1} parent=11 // pred_fallthru
          _
        // Predicated region
        $region45: #{tpu_custom_call.1} parent=11 // pred_check
          %p329 = pneg %p233
        $region46: #{tpu_custom_call.1} parent=11 // pred_check_branch
          %331 = sbr.rel (%p329) target = $region48
        $region47: #{tpu_custom_call.1} parent=11 // pred_region
          _
        $region48: #{tpu_custom_call.1} parent=11 // pred_fallthru
          _
        // Predicated region
        $region49: #{tpu_custom_call.1} parent=11 // pred_check
          %p332 = pneg %p254
        $region50: #{tpu_custom_call.1} parent=11 // pred_check_branch
          %334 = sbr.rel (%p332) target = $region52
        $region51: #{tpu_custom_call.1} parent=11 // pred_region
          _
        $region52: #{tpu_custom_call.1} parent=11 // pred_fallthru
          _
      $region12: #{tpu_custom_call.1} parent=5 // pred_fallthru
        _
      %p335 = scmp.lt.s32.totalorder %s18, 3
      // Predicated region
      $region53: #{tpu_custom_call.1} parent=5 // pred_check
        %p336 = pneg %p335
      $region54: #{tpu_custom_call.1} parent=5 // pred_check_branch
        %338 = sbr.rel (%p336) target = $region56
      $region55: #{tpu_custom_call.1} parent=5 // pred_region
        // Predicated region
        $region57: #{tpu_custom_call.1} parent=55 // pred_check
          %p339 = pneg %p38
        $region58: #{tpu_custom_call.1} parent=55 // pred_check_branch
          %341 = sbr.rel (%p339) target = $region60
        $region59: #{tpu_custom_call.1} parent=55 // pred_region
          %s342 = smul.u32 2, %s18
          %p343 = scmp.lt.s32.totalorder %s342, 5
          %s344 = scalar_select %p343, %s342, 5
          %s345 = smul.addr %s344, 8
          %s346 = scalar_lea.vmem %s0, %s345
          %s347 = smul.u32 2, %s18
        $region60: #{tpu_custom_call.1} parent=55 // pred_fallthru
          _
      $region56: #{tpu_custom_call.1} parent=5 // pred_fallthru
        _
      %p348 = scmp.le.s32.totalorder 1, %s18
      %p349 = scmp.lt.s32.totalorder %s18, 4
      %p350 = pnand %p348, %p349
      %p351 = pneg %p350
      // Predicated region
      $region61: #{tpu_custom_call.1} parent=5 // pred_check
        _
      $region62: #{tpu_custom_call.1} parent=5 // pred_check_branch
        %353 = sbr.rel (%p350) target = $region64
      $region63: #{tpu_custom_call.1} parent=5 // pred_region
        %s354 = ssub.s32 %s18, 1
        // Predicated region
        $region65: #{tpu_custom_call.1} parent=63 // pred_check
          %p355 = pneg %p149
        $region66: #{tpu_custom_call.1} parent=63 // pred_check_branch
          %357 = sbr.rel (%p355) target = $region68
        $region67: #{tpu_custom_call.1} parent=63 // pred_region
          %358 = dma.done [#allocation3], 2048
        $region68: #{tpu_custom_call.1} parent=63 // pred_fallthru
          _
        %s359 = smul.u32 2, %s23
        %p360 = scmp.lt.s32.totalorder %s359, 5
        %s361 = scalar_select %p360, %s359, 5
        %s362 = smul.addr %s361, 8
        %s363 = scalar_lea.vmem %s0, %s362
        %p364 = pneg %p44
        %p365 = pneg %p41
        %p366 = pneg %p65
        %p367 = pneg %p62
        %p368 = pneg %p86
        %p369 = pneg %p83
        %p370 = pneg %p107
        %p371 = pneg %p104
        %p372 = pneg %p128
        %p373 = pneg %p125
        %p374 = pneg %p149
        %p375 = pneg %p146
        %p376 = pneg %p170
        %p377 = pneg %p167
        %p378 = pneg %p191
        %p379 = pneg %p188
        %p380 = pneg %p212
        %p381 = pneg %p209
        %p382 = pneg %p233
        %p383 = pneg %p230
        %p384 = pneg %p254
        %p385 = pneg %p251
        %p386 = pneg %p280
        %p387 = pneg %p277
        %s388 = smul.u32 2, %s23
        %p389 = scmp.lt.s32.totalorder %s388, 5
        %s390 = scalar_select %p389, %s388, 5
        %s391 = smul.addr %s390, 8
        %s392 = scalar_lea.vmem %s11, %s391
        %s393 = smul.u32 2, %s23
        %p394 = scmp.lt.s32.totalorder %s393, 5
        %s395 = scalar_select %p394, %s393, 5
        %s396 = smul.addr %s395, 8
        %s397 = scalar_lea.vmem %s0, %s396
        %s398 = smul.u32 2, %s23
        %s399 = smul.u32 2, %s23
        %p400 = scmp.lt.s32.totalorder %s399, 5
        %s401 = scalar_select %p400, %s399, 5
        %s402 = smul.addr %s401, 8
        %s403 = scalar_lea.vmem %s11, %s402
        %s404 = smul.u32 2, %s23
        %v405 = vld [vmem:[%s397] sm:$0xff]
        %v406 = vld [vmem:[%s397 + $0x8] sm:$0xff]
        %v407 = vld [vmem:[%s1] sm:$0xff]
        %v408 = vld [vmem:[%s1 + $0x8] sm:$0xff]
        %v409 = vld [vmem:[%s1 + $0x10] sm:$0xff]
        %v410 = vld [vmem:[%s2] sm:$0x1]
        %v412 = vlaneseq
        %v413 = vshrl.u32 %v412, 7
        %v414 = vsub.s32 0, %v413
        %v415 = vrot.slane %v410, %v414
        %vm417 = vcmask 195584
        %v419 = vsel %vm417, %v405, 0
        %v422 = vsel %vm417, %v406, 0
        %424 = vmatprep.subr.mxu0 0.0
        %425 = vmatpush1.msra.mxu0 %v407
        %426 = vmatprep.subr.mxu0 0.0
        %427 = vmatpush1.msra.mxu0 %v408
        %428 = vmatprep.subr.mxu0 0.0
        %429 = vmatpush1.msra.mxu0 %v409
        %430 = vmatprep.subr.mxu0 0.0
        %431 = vmatpush1.msra.mxu0 0.0
        %432 = vmatprep.subr.mxu0 0.0
        %433 = vmatpush1.msra.mxu0 0.0
        %434 = vmatprep.subr.mxu0 0.0
        %435 = vmatpush1.msra.mxu0 0.0
        %436 = vmatprep.subr.mxu0 0.0
        %437 = vmatpush1.msra.mxu0 0.0
        %438 = vmatprep.subr.mxu0 0.0
        %439 = vmatpush1.msra.mxu0 0.0
        %440 = vmatprep.subr.mxu0 0.0
        %441 = vmatpush1.msra.mxu0 0.0
        %442 = vmatprep.subr.mxu0 0.0
        %443 = vmatpush1.msra.mxu0 0.0
        %444 = vmatprep.subr.mxu0 0.0
        %445 = vmatpush1.msra.mxu0 0.0
        %446 = vmatprep.subr.mxu0 0.0
        %447 = vmatpush1.msra.mxu0 0.0
        %448 = vmatprep.subr.mxu0 0.0
        %449 = vmatpush1.msra.mxu0 0.0
        %450 = vmatprep.subr.mxu0 0.0
        %451 = vmatpush1.msra.mxu0 0.0
        %452 = vmatprep.subr.mxu0 0.0
        %453 = vmatpush1.msra.mxu0 0.0
        %454 = vmatprep.subr.mxu0 0.0
        %455 = vmatpush1.msra.mxu0 0.0
        %456 = vmatprep.subr.mxu0 0.0
        %457 = vmatpush1.msra.mxu0 0.0
        %458 = vmatprep.subr.mxu0 0.0
        %459 = vmatpush1.msra.mxu0 0.0
        %460 = vmatprep.subr.mxu0 0.0
        %461 = vmatpush1.msra.mxu0 0.0
        %462 = vmatprep.subr.mxu0 0.0
        %463 = vmatpush1.msra.mxu0 0.0
        %464 = vmatprep.subr.mxu0 0.0
        %465 = vmatpush1.msra.mxu0 0.0
        %466 = vmatprep.subr.mxu0 0.0
        %467 = vmatpush1.msra.mxu0 0.0
        %468 = vmatprep.subr.mxu0 0.0
        %469 = vmatpush1.msra.mxu0 0.0
        %470 = vmatprep.subr.mxu0 0.0
        %471 = vmatpush1.msra.mxu0 0.0
        %472 = vmatprep.subr.mxu0 0.0
        %473 = vmatpush1.msra.mxu0 0.0
        %474 = vmatprep.subr.mxu0 0.0
        %475 = vmatpush1.msra.mxu0 0.0
        %476 = vmatprep.subr.mxu0 0.0
        %477 = vmatpush1.msra.mxu0 0.0
        %478 = vmatprep.subr.mxu0 0.0
        %479 = vmatpush1.msra.mxu0 0.0
        %480 = vmatprep.subr.mxu0 0.0
        %481 = vmatpush1.msra.mxu0 0.0
        %482 = vmatprep.subr.mxu0 0.0
        %483 = vmatpush1.msra.mxu0 0.0
        %484 = vmatprep.subr.mxu0 0.0
        %485 = vmatpush1.msra.mxu0 0.0
        %486 = vmatprep.subr.mxu0 0.0
        %487 = vmatpush1.msra.mxu0 0.0
        %488 = vmatprep.mubr.f32.mxu0 0.0
        %489 = vmatmul.mubr.f32.gmra.mrb[0].mxu0 %v419
        %v490 = vpop.f32.mrb[0].mxu0
        %v491 = vadd.f32 %v415, %v490
        %v492 = vpop.f32.mrb[0].mxu0
        %493 = vmatprep.mubr.f32.mxu0 0.0
        %494 = vmatmul.mubr.f32.gmra.mrb[0].mxu0 %v422
        %v495 = vpop.f32.mrb[0].mxu0
        %v496 = vadd.f32 %v415, %v495
        %v497 = vpop.f32.mrb[0].mxu0
        %498 = vdwg.mxu0
        %v499 = vxor.u32 %v491, 2147483648
        %v500 = vxor.u32 %v496, 2147483648
        %v501 = vmul.f32 %v499, 1.442695
        %v502 = vpow.pop %v501
        %v503 = vmul.f32 %v500, 1.442695
        %v504 = vpow.pop %v503
        %v505 = vadd.f32 %v502, 1.0
        %v506 = vadd.f32 %v504, 1.0
        %v507 = vrcp.pop %v505
        %v508 = vmul.f32 1.0, %v507
        %v509 = vrcp.pop %v506
        %v510 = vmul.f32 1.0, %v509
        %v511 = vmul.f32 %v491, %v508
        %v512 = vmul.f32 %v496, %v510
        %v513 = vld [vmem:[%s3] sm:$0xff]
        %v514 = vld [vmem:[%s3 + $0x8] sm:$0xff]
        %v515 = vld [vmem:[%s3 + $0x10] sm:$0xff]
        %v516 = vld [vmem:[%s3 + $0x18] sm:$0xff]
        %v517 = vld [vmem:[%s3 + $0x20] sm:$0xff]
        %v518 = vld [vmem:[%s3 + $0x28] sm:$0xff]
        %v519 = vld [vmem:[%s3 + $0x30] sm:$0xff]
        %v520 = vld [vmem:[%s3 + $0x38] sm:$0xff]
        %v521 = vld [vmem:[%s3 + $0x40] sm:$0xff]
        %v522 = vld [vmem:[%s3 + $0x48] sm:$0xff]
        %v523 = vld [vmem:[%s3 + $0x50] sm:$0xff]
        %v524 = vld [vmem:[%s3 + $0x58] sm:$0xff]
        %v525 = vld [vmem:[%s3 + $0x60] sm:$0xff]
        %v526 = vld [vmem:[%s3 + $0x68] sm:$0xff]
        %v527 = vld [vmem:[%s3 + $0x70] sm:$0xff]
        %v528 = vld [vmem:[%s3 + $0x78] sm:$0xff]
        %v529 = vld [vmem:[%s4] sm:$0x1]
        %v531 = vlaneseq
        %v532 = vshrl.u32 %v531, 7
        %v533 = vsub.s32 0, %v532
        %v534 = vrot.slane %v529, %v533
        %536 = vmatprep.subr.mxu0 0.0
        %537 = vmatpush1.msra.mxu0 %v513
        %538 = vmatprep.subr.mxu0 0.0
        %539 = vmatpush1.msra.mxu0 %v514
        %540 = vmatprep.subr.mxu0 0.0
        %541 = vmatpush1.msra.mxu0 %v515
        %542 = vmatprep.subr.mxu0 0.0
        %543 = vmatpush1.msra.mxu0 %v516
        %544 = vmatprep.subr.mxu0 0.0
        %545 = vmatpush1.msra.mxu0 %v517
        %546 = vmatprep.subr.mxu0 0.0
        %547 = vmatpush1.msra.mxu0 %v518
        %548 = vmatprep.subr.mxu0 0.0
        %549 = vmatpush1.msra.mxu0 %v519
        %550 = vmatprep.subr.mxu0 0.0
        %551 = vmatpush1.msra.mxu0 %v520
        %552 = vmatprep.subr.mxu0 0.0
        %553 = vmatpush1.msra.mxu0 %v521
        %554 = vmatprep.subr.mxu0 0.0
        %555 = vmatpush1.msra.mxu0 %v522
        %556 = vmatprep.subr.mxu0 0.0
        %557 = vmatpush1.msra.mxu0 %v523
        %558 = vmatprep.subr.mxu0 0.0
        %559 = vmatpush1.msra.mxu0 %v524
        %560 = vmatprep.subr.mxu0 0.0
        %561 = vmatpush1.msra.mxu0 %v525
        %562 = vmatprep.subr.mxu0 0.0
        %563 = vmatpush1.msra.mxu0 %v526
        %564 = vmatprep.subr.mxu0 0.0
        %565 = vmatpush1.msra.mxu0 %v527
        %566 = vmatprep.subr.mxu0 0.0
        %567 = vmatpush1.msra.mxu0 %v528
        %568 = vmatprep.subr.mxu0 0.0
        %569 = vmatpush1.msra.mxu0 0.0
        %570 = vmatprep.subr.mxu0 0.0
        %571 = vmatpush1.msra.mxu0 0.0
        %572 = vmatprep.subr.mxu0 0.0
        %573 = vmatpush1.msra.mxu0 0.0
        %574 = vmatprep.subr.mxu0 0.0
        %575 = vmatpush1.msra.mxu0 0.0
        %576 = vmatprep.subr.mxu0 0.0
        %577 = vmatpush1.msra.mxu0 0.0
        %578 = vmatprep.subr.mxu0 0.0
        %579 = vmatpush1.msra.mxu0 0.0
        %580 = vmatprep.subr.mxu0 0.0
        %581 = vmatpush1.msra.mxu0 0.0
        %582 = vmatprep.subr.mxu0 0.0
        %583 = vmatpush1.msra.mxu0 0.0
        %584 = vmatprep.subr.mxu0 0.0
        %585 = vmatpush1.msra.mxu0 0.0
        %586 = vmatprep.subr.mxu0 0.0
        %587 = vmatpush1.msra.mxu0 0.0
        %588 = vmatprep.subr.mxu0 0.0
        %589 = vmatpush1.msra.mxu0 0.0
        %590 = vmatprep.subr.mxu0 0.0
        %591 = vmatpush1.msra.mxu0 0.0
        %592 = vmatprep.subr.mxu0 0.0
        %593 = vmatpush1.msra.mxu0 0.0
        %594 = vmatprep.subr.mxu0 0.0
        %595 = vmatpush1.msra.mxu0 0.0
        %596 = vmatprep.subr.mxu0 0.0
        %597 = vmatpush1.msra.mxu0 0.0
        %598 = vmatprep.subr.mxu0 0.0
        %599 = vmatpush1.msra.mxu0 0.0
        %600 = vmatprep.mubr.f32.mxu0 0.0
        %601 = vmatmul.mubr.f32.gmra.mrb[0].mxu0 %v511
        %v602 = vpop.f32.mrb[0].mxu0
        %v603 = vadd.f32 %v534, %v602
        %v604 = vpop.f32.mrb[0].mxu0
        %605 = vmatprep.mubr.f32.mxu0 0.0
        %606 = vmatmul.mubr.f32.gmra.mrb[0].mxu0 %v512
        %v607 = vpop.f32.mrb[0].mxu0
        %v608 = vadd.f32 %v534, %v607
        %v609 = vpop.f32.mrb[0].mxu0
        %610 = vdwg.mxu0
        %v611 = vxor.u32 %v603, 2147483648
        %v612 = vxor.u32 %v608, 2147483648
        %v613 = vmul.f32 %v611, 1.442695
        %v614 = vpow.pop %v613
        %v615 = vmul.f32 %v612, 1.442695
        %v616 = vpow.pop %v615
        %v617 = vadd.f32 %v614, 1.0
        %v618 = vadd.f32 %v616, 1.0
        %v619 = vrcp.pop %v617
        %v620 = vmul.f32 1.0, %v619
        %v621 = vrcp.pop %v618
        %v622 = vmul.f32 1.0, %v621
        %v623 = vmul.f32 %v603, %v620
        %v624 = vmul.f32 %v608, %v622
        %v625 = vld [vmem:[#allocation2] sm:$0xff]
        %v626 = vld [vmem:[#allocation2 + $0x8] sm:$0xff]
        %v627 = vld [vmem:[#allocation2 + $0x10] sm:$0xff]
        %v628 = vld [vmem:[#allocation2 + $0x18] sm:$0xff]
        %v629 = vld [vmem:[#allocation2 + $0x20] sm:$0xff]
        %v630 = vld [vmem:[#allocation2 + $0x28] sm:$0xff]
        %v631 = vld [vmem:[#allocation2 + $0x30] sm:$0xff]
        %v632 = vld [vmem:[#allocation2 + $0x38] sm:$0xff]
        %v633 = vld [vmem:[#allocation2 + $0x40] sm:$0xff]
        %v634 = vld [vmem:[#allocation2 + $0x48] sm:$0xff]
        %v635 = vld [vmem:[#allocation2 + $0x50] sm:$0xff]
        %v636 = vld [vmem:[#allocation2 + $0x58] sm:$0xff]
        %v637 = vld [vmem:[#allocation2 + $0x60] sm:$0xff]
        %v638 = vld [vmem:[#allocation2 + $0x68] sm:$0xff]
        %v639 = vld [vmem:[#allocation2 + $0x70] sm:$0xff]
        %v640 = vld [vmem:[#allocation2 + $0x78] sm:$0xff]
        %v641 = vld [vmem:[%s6] sm:$0x1]
        %v643 = vlaneseq
        %v644 = vshrl.u32 %v643, 7
        %v645 = vsub.s32 0, %v644
        %v646 = vrot.slane %v641, %v645
        %648 = vmatprep.subr.mxu0 0.0
        %649 = vmatpush1.msra.mxu0 %v625
        %650 = vmatprep.subr.mxu0 0.0
        %651 = vmatpush1.msra.mxu0 %v626
        %652 = vmatprep.subr.mxu0 0.0
        %653 = vmatpush1.msra.mxu0 %v627
        %654 = vmatprep.subr.mxu0 0.0
        %655 = vmatpush1.msra.mxu0 %v628
        %656 = vmatprep.subr.mxu0 0.0
        %657 = vmatpush1.msra.mxu0 %v629
        %658 = vmatprep.subr.mxu0 0.0
        %659 = vmatpush1.msra.mxu0 %v630
        %660 = vmatprep.subr.mxu0 0.0
        %661 = vmatpush1.msra.mxu0 %v631
        %662 = vmatprep.subr.mxu0 0.0
        %663 = vmatpush1.msra.mxu0 %v632
        %664 = vmatprep.subr.mxu0 0.0
        %665 = vmatpush1.msra.mxu0 %v633
        %666 = vmatprep.subr.mxu0 0.0
        %667 = vmatpush1.msra.mxu0 %v634
        %668 = vmatprep.subr.mxu0 0.0
        %669 = vmatpush1.msra.mxu0 %v635
        %670 = vmatprep.subr.mxu0 0.0
        %671 = vmatpush1.msra.mxu0 %v636
        %672 = vmatprep.subr.mxu0 0.0
        %673 = vmatpush1.msra.mxu0 %v637
        %674 = vmatprep.subr.mxu0 0.0
        %675 = vmatpush1.msra.mxu0 %v638
        %676 = vmatprep.subr.mxu0 0.0
        %677 = vmatpush1.msra.mxu0 %v639
        %678 = vmatprep.subr.mxu0 0.0
        %679 = vmatpush1.msra.mxu0 %v640
        %680 = vmatprep.subr.mxu0 0.0
        %681 = vmatpush1.msra.mxu0 0.0
        %682 = vmatprep.subr.mxu0 0.0
        %683 = vmatpush1.msra.mxu0 0.0
        %684 = vmatprep.subr.mxu0 0.0
        %685 = vmatpush1.msra.mxu0 0.0
        %686 = vmatprep.subr.mxu0 0.0
        %687 = vmatpush1.msra.mxu0 0.0
        %688 = vmatprep.subr.mxu0 0.0
        %689 = vmatpush1.msra.mxu0 0.0
        %690 = vmatprep.subr.mxu0 0.0
        %691 = vmatpush1.msra.mxu0 0.0
        %692 = vmatprep.subr.mxu0 0.0
        %693 = vmatpush1.msra.mxu0 0.0
        %694 = vmatprep.subr.mxu0 0.0
        %695 = vmatpush1.msra.mxu0 0.0
        %696 = vmatprep.subr.mxu0 0.0
        %697 = vmatpush1.msra.mxu0 0.0
        %698 = vmatprep.subr.mxu0 0.0
        %699 = vmatpush1.msra.mxu0 0.0
        %700 = vmatprep.subr.mxu0 0.0
        %701 = vmatpush1.msra.mxu0 0.0
        %702 = vmatprep.subr.mxu0 0.0
        %703 = vmatpush1.msra.mxu0 0.0
        %704 = vmatprep.subr.mxu0 0.0
        %705 = vmatpush1.msra.mxu0 0.0
        %706 = vmatprep.subr.mxu0 0.0
        %707 = vmatpush1.msra.mxu0 0.0
        %708 = vmatprep.subr.mxu0 0.0
        %709 = vmatpush1.msra.mxu0 0.0
        %710 = vmatprep.subr.mxu0 0.0
        %711 = vmatpush1.msra.mxu0 0.0
        %712 = vmatprep.mubr.f32.mxu0 0.0
        %713 = vmatmul.mubr.f32.gmra.mrb[0].mxu0 %v623
        %v714 = vpop.f32.mrb[0].mxu0
        %v715 = vadd.f32 %v646, %v714
        %v716 = vpop.f32.mrb[0].mxu0
        %717 = vmatprep.mubr.f32.mxu0 0.0
        %718 = vmatmul.mubr.f32.gmra.mrb[0].mxu0 %v624
        %v719 = vpop.f32.mrb[0].mxu0
        %v720 = vadd.f32 %v646, %v719
        %v721 = vpop.f32.mrb[0].mxu0
        %722 = vdwg.mxu0
        %v723 = vxor.u32 %v715, 2147483648
        %v724 = vxor.u32 %v720, 2147483648
        %v725 = vmul.f32 %v723, 1.442695
        %v726 = vpow.pop %v725
        %v727 = vmul.f32 %v724, 1.442695
        %v728 = vpow.pop %v727
        %v729 = vadd.f32 %v726, 1.0
        %v730 = vadd.f32 %v728, 1.0
        %v731 = vrcp.pop %v729
        %v732 = vmul.f32 1.0, %v731
        %v733 = vrcp.pop %v730
        %v734 = vmul.f32 1.0, %v733
        %v735 = vmul.f32 %v715, %v732
        %v736 = vmul.f32 %v720, %v734
        %v737 = vld [vmem:[%s7] sm:$0xff]
        %v738 = vld [vmem:[%s7 + $0x8] sm:$0xff]
        %v739 = vld [vmem:[%s7 + $0x10] sm:$0xff]
        %v740 = vld [vmem:[%s7 + $0x18] sm:$0xff]
        %v741 = vld [vmem:[%s7 + $0x20] sm:$0xff]
        %v742 = vld [vmem:[%s7 + $0x28] sm:$0xff]
        %v743 = vld [vmem:[%s7 + $0x30] sm:$0xff]
        %v744 = vld [vmem:[%s7 + $0x38] sm:$0xff]
        %v745 = vld [vmem:[%s7 + $0x40] sm:$0xff]
        %v746 = vld [vmem:[%s7 + $0x48] sm:$0xff]
        %v747 = vld [vmem:[%s7 + $0x50] sm:$0xff]
        %v748 = vld [vmem:[%s7 + $0x58] sm:$0xff]
        %v749 = vld [vmem:[%s7 + $0x60] sm:$0xff]
        %v750 = vld [vmem:[%s7 + $0x68] sm:$0xff]
        %v751 = vld [vmem:[%s7 + $0x70] sm:$0xff]
        %v752 = vld [vmem:[%s7 + $0x78] sm:$0xff]
        %v753 = vld [vmem:[%s8] sm:$0x1]
        %v755 = vlaneseq
        %v756 = vshrl.u32 %v755, 7
        %v757 = vsub.s32 0, %v756
        %v758 = vrot.slane %v753, %v757
        %760 = vmatprep.subr.mxu0 0.0
        %761 = vmatpush1.msra.mxu0 %v737
        %762 = vmatprep.subr.mxu0 0.0
        %763 = vmatpush1.msra.mxu0 %v738
        %764 = vmatprep.subr.mxu0 0.0
        %765 = vmatpush1.msra.mxu0 %v739
        %766 = vmatprep.subr.mxu0 0.0
        %767 = vmatpush1.msra.mxu0 %v740
        %768 = vmatprep.subr.mxu0 0.0
        %769 = vmatpush1.msra.mxu0 %v741
        %770 = vmatprep.subr.mxu0 0.0
        %771 = vmatpush1.msra.mxu0 %v742
        %772 = vmatprep.subr.mxu0 0.0
        %773 = vmatpush1.msra.mxu0 %v743
        %774 = vmatprep.subr.mxu0 0.0
        %775 = vmatpush1.msra.mxu0 %v744
        %776 = vmatprep.subr.mxu0 0.0
        %777 = vmatpush1.msra.mxu0 %v745
        %778 = vmatprep.subr.mxu0 0.0
        %779 = vmatpush1.msra.mxu0 %v746
        %780 = vmatprep.subr.mxu0 0.0
        %781 = vmatpush1.msra.mxu0 %v747
        %782 = vmatprep.subr.mxu0 0.0
        %783 = vmatpush1.msra.mxu0 %v748
        %784 = vmatprep.subr.mxu0 0.0
        %785 = vmatpush1.msra.mxu0 %v749
        %786 = vmatprep.subr.mxu0 0.0
        %787 = vmatpush1.msra.mxu0 %v750
        %788 = vmatprep.subr.mxu0 0.0
        %789 = vmatpush1.msra.mxu0 %v751
        %790 = vmatprep.subr.mxu0 0.0
        %791 = vmatpush1.msra.mxu0 %v752
        %792 = vmatprep.subr.mxu0 0.0
        %793 = vmatpush1.msra.mxu0 0.0
        %794 = vmatprep.subr.mxu0 0.0
        %795 = vmatpush1.msra.mxu0 0.0
        %796 = vmatprep.subr.mxu0 0.0
        %797 = vmatpush1.msra.mxu0 0.0
        %798 = vmatprep.subr.mxu0 0.0
        %799 = vmatpush1.msra.mxu0 0.0
        %800 = vmatprep.subr.mxu0 0.0
        %801 = vmatpush1.msra.mxu0 0.0
        %802 = vmatprep.subr.mxu0 0.0
        %803 = vmatpush1.msra.mxu0 0.0
        %804 = vmatprep.subr.mxu0 0.0
        %805 = vmatpush1.msra.mxu0 0.0
        %806 = vmatprep.subr.mxu0 0.0
        %807 = vmatpush1.msra.mxu0 0.0
        %808 = vmatprep.subr.mxu0 0.0
        %809 = vmatpush1.msra.mxu0 0.0
        %810 = vmatprep.subr.mxu0 0.0
        %811 = vmatpush1.msra.mxu0 0.0
        %812 = vmatprep.subr.mxu0 0.0
        %813 = vmatpush1.msra.mxu0 0.0
        %814 = vmatprep.subr.mxu0 0.0
        %815 = vmatpush1.msra.mxu0 0.0
        %816 = vmatprep.subr.mxu0 0.0
        %817 = vmatpush1.msra.mxu0 0.0
        %818 = vmatprep.subr.mxu0 0.0
        %819 = vmatpush1.msra.mxu0 0.0
        %820 = vmatprep.subr.mxu0 0.0
        %821 = vmatpush1.msra.mxu0 0.0
        %822 = vmatprep.subr.mxu0 0.0
        %823 = vmatpush1.msra.mxu0 0.0
        %824 = vmatprep.mubr.f32.mxu0 0.0
        %825 = vmatmul.mubr.f32.gmra.mrb[0].mxu0 %v735
        %v826 = vpop.f32.mrb[0].mxu0
        %v827 = vadd.f32 %v758, %v826
        %v828 = vpop.f32.mrb[0].mxu0
        %829 = vmatprep.mubr.f32.mxu0 0.0
        %830 = vmatmul.mubr.f32.gmra.mrb[0].mxu0 %v736
        %v831 = vpop.f32.mrb[0].mxu0
        %v832 = vadd.f32 %v758, %v831
        %v833 = vpop.f32.mrb[0].mxu0
        %834 = vdwg.mxu0
        %v835 = vxor.u32 %v827, 2147483648
        %v836 = vxor.u32 %v832, 2147483648
        %v837 = vmul.f32 %v835, 1.442695
        %v838 = vpow.pop %v837
        %v839 = vmul.f32 %v836, 1.442695
        %v840 = vpow.pop %v839
        %v841 = vadd.f32 %v838, 1.0
        %v842 = vadd.f32 %v840, 1.0
        %v843 = vrcp.pop %v841
        %v844 = vmul.f32 1.0, %v843
        %v845 = vrcp.pop %v842
        %v846 = vmul.f32 1.0, %v845
        %v847 = vld [vmem:[%s10] sm:$0x1]
        %v849 = vlaneseq
        %v850 = vshrl.u32 %v849, 7
        %v851 = vsub.s32 0, %v850
        %v852 = vrot.slane %v847, %v851
        %v854 = vmul.f32 %v844, %v852
        %v855 = vmul.f32 %v846, %v852
        %v856 = vld [vmem:[%s9] sm:$0x1]
        %v858 = vlaneseq
        %v859 = vshrl.u32 %v858, 7
        %v860 = vsub.s32 0, %v859
        %v861 = vrot.slane %v856, %v860
        %v863 = vadd.f32 %v854, %v861
        %v864 = vadd.f32 %v855, %v861
        %vm865 = vcmask 31744
        %866 = vst.msk [vmem:[%s403] sm:$0xff] %vm865, %v863
        %867 = vst.msk [vmem:[%s403 + $0x8] sm:$0xff] %vm865, %v864
        %s868 = smul.u32 2, %s23
        %p869 = scmp.lt.s32.totalorder %s868, 5
        %s870 = scalar_select %p869, %s868, 5
        %s871 = smul.addr %s870, 8
        %s872 = scalar_lea.vmem %s11, %s871
        // Predicated region
        $region69: #{tpu_custom_call.1} parent=63 // pred_check
          %p873 = pneg %p277
        $region70: #{tpu_custom_call.1} parent=63 // pred_check_branch
          %875 = sbr.rel (%p873) target = $region72
        $region71: #{tpu_custom_call.1} parent=63 // pred_region
          %s876 = smul.u32 2, %s23
        $region72: #{tpu_custom_call.1} parent=63 // pred_fallthru
          _
      $region64: #{tpu_custom_call.1} parent=5 // pred_fallthru
        _
      %p877 = scmp.le.s32.totalorder 2, %s18
      // Predicated region
      $region73: #{tpu_custom_call.1} parent=5 // pred_check
        %p878 = pneg %p877
      $region74: #{tpu_custom_call.1} parent=5 // pred_check_branch
        %880 = sbr.rel (%p878) target = $region76
      $region75: #{tpu_custom_call.1} parent=5 // pred_region
        %s881 = ssub.s32 %s18, 2
        // Predicated region
        $region77: #{tpu_custom_call.1} parent=75 // pred_check
          %p882 = pneg %p283
        $region78: #{tpu_custom_call.1} parent=75 // pred_check_branch
          %884 = sbr.rel (%p882) target = $region80
        $region79: #{tpu_custom_call.1} parent=75 // pred_region
          %s885 = smul.u32 2, %s24
          %p886 = scmp.lt.s32.totalorder %s885, 5
          %s887 = scalar_select %p886, %s885, 5
          %s888 = smul.addr %s887, 8
          %s889 = scalar_lea.vmem %s11, %s888
        $region80: #{tpu_custom_call.1} parent=75 // pred_fallthru
          _
      $region76: #{tpu_custom_call.1} parent=5 // pred_fallthru
        _
    $region6: #{tpu_custom_call.1} parent=1 // loop_footer
      %s22 = sadd.s32 1, %s18
    $region7: #{tpu_custom_call.1} parent=1 // loop_footer_branch
      %17 = sbr.rel target = $region3
    $region8: #{tpu_custom_call.1} parent=1 // loop_exit
      _
    %890 = vsyncpa [#allocation3], 1
    %s891 = scalar_lea.sflag [#allocation3], 1
    %892 = vsyncpa %s891, 1

</llo_original>
